<compile_context>
chip_gen: v6e
topology: v6e:2x2x1
jax: 0.10.0
libtpu: 0.0.40
codegen_flags: <defaults>
</compile_context>

<pallas_src>
import functools

import jax
import jax.numpy as jnp
from jax.experimental import pallas as pl
from jax.experimental.pallas import tpu as pltpu


def _ssgu_kernel(u_ref, v_ref, msum_ref, ax_ref, ay_ref, gy_ref, bias_ref,
                 o_ref, *, inv_half, eps):
    f32 = jnp.float32
    bf16 = jnp.bfloat16

    u = u_ref[...].astype(f32)          # (BH, L) gate half
    v = v_ref[...].astype(f32)          # (BH, L) normalized / mixed half
    msum = msum_ref[...]                # (L, L) bf16, exact 0/1 group-sum matrix

    # Per-pixel channel-group statistics via the MXU.  The hi/lo split keeps
    # LayerNorm stats at ~f32 accuracy even though MXU operands are bf16.
    def group_mean(a):
        hi = a.astype(bf16)
        lo = (a - hi.astype(f32)).astype(bf16)
        s = (jnp.dot(hi, msum, preferred_element_type=f32)
             + jnp.dot(lo, msum, preferred_element_type=f32))
        return s * inv_half

    mean = group_mean(v)
    d = v - mean
    var = group_mean(d * d)
    vhat = d * jax.lax.rsqrt(var + eps)

    vb = vhat.astype(bf16)
    # x-mix: Linear over W per row; gamma*mask_x already folded into ax.
    out_x = jnp.dot(vb, ax_ref[...], preferred_element_type=f32)          # (BH, L)
    # y-mix: Linear over H == block-diagonal-over-batch row mix.
    out_y = jnp.dot(ay_ref[...], vb, preferred_element_type=f32) * gy_ref[...]
    o_ref[...] = ((out_x + out_y + bias_ref[...]) * u).astype(o_ref.dtype)


def ssgu_forward(x, params):
    """SSGU forward.  x: (B, H, W, C) channels-last, C divisible by 4."""
    B, H, W, C = x.shape
    half, q = C // 2, C // 4
    f32, bf16 = jnp.float32, jnp.bfloat16
    BH, L = B * H, W * half

    gamma = params["ln_g"].astype(f32)     # (half,)
    beta = params["ln_b"].astype(f32)      # (half,)
    wx = params["x_w"].astype(f32)         # (W, W)  x_axis_linear.weight (out, in)
    bx = params["x_b"].astype(f32)         # (W,)
    wy = params["y_w"].astype(f32)         # (H, H)  y_axis_linear.weight (out, in)
    by = params["y_b"].astype(f32)         # (H,)

    mask_x = (jnp.arange(half) < q).astype(f32)
    mask_y = 1.0 - mask_x

    # Lane-dense activations: row = b*H + h, lane = w*half + c.  Free reshapes.
    u2 = x[..., :half].reshape(BH, L).astype(f32)
    v2 = x[..., half:].reshape(BH, L).astype(f32)

    # Exact 0/1 per-pixel channel-group-sum matrix (bf16-exact).
    m_sum = jnp.kron(jnp.eye(W, dtype=f32),
                     jnp.ones((half, half), f32)).astype(bf16)             # (L, L)
    # x-mix operator with gamma*mask_x folded in: out_x = vhat @ a_x.
    a_x = jnp.kron(wx.T, jnp.diag(gamma * mask_x)).astype(bf16)            # (L, L)
    # y-mix operator: block-diagonal over batch: out_y = a_y @ vhat.
    a_y = jnp.kron(jnp.eye(B, dtype=f32), wy).astype(bf16)                 # (BH, BH)
    # Per-lane gamma*mask_y scale for the y branch.
    g_y = jnp.tile(gamma * mask_y, W).reshape(1, L)                        # (1, L)

    # Single additive term: linear biases + LN beta pushed through each mix.
    rs_wx = wx.sum(axis=1)                                                 # (W,)
    rs_wy = wy.sum(axis=1)                                                 # (H,)
    x_part = jnp.kron(bx, mask_x) + jnp.kron(rs_wx, beta * mask_x)         # (L,)
    y_part = (by[:, None] * jnp.tile(mask_y, W)[None, :]
              + rs_wy[:, None] * jnp.tile(beta * mask_y, W)[None, :])      # (H, L)
    bias = x_part[None, :] + jnp.tile(y_part, (B, 1))                      # (BH, L)

    kernel = functools.partial(_ssgu_kernel, inv_half=float(1.0 / half), eps=1e-5)
    out2 = pl.pallas_call(
        kernel,
        out_shape=jax.ShapeDtypeStruct((BH, L), x.dtype),
        in_specs=[pl.BlockSpec(memory_space=pltpu.MemorySpace.VMEM)] * 7,
        out_specs=pl.BlockSpec(memory_space=pltpu.MemorySpace.VMEM),
    )(u2, v2, m_sum, a_x, a_y, g_y, bias)
    return out2.reshape(B, H, W, half)


def ssgu_reference(x, params):
    """Pure-JAX reference matching the PyTorch SSGU.forward semantics."""
    C = x.shape[-1]
    half, q = C // 2, C // 4
    u, v = x[..., :half], x[..., half:]
    mean = v.mean(-1, keepdims=True)
    var = ((v - mean) ** 2).mean(-1, keepdims=True)
    vn = (v - mean) / jnp.sqrt(var + 1e-5) * params["ln_g"] + params["ln_b"]
    v_x, v_y = vn[..., :q], vn[..., q:]
    hp = jax.lax.Precision.HIGHEST
    # x_axis_linear: Linear(W, W) applied along W (torch y = x @ W.T + b)
    v_x = jnp.einsum("bhic,ji->bhjc", v_x, params["x_w"], precision=hp) \
        + params["x_b"][None, None, :, None]
    # y_axis_linear: Linear(H, H) applied along H
    v_y = jnp.einsum("bhwc,jh->bjwc", v_y, params["y_w"], precision=hp) \
        + params["y_b"][None, :, None, None]
    spatial = jnp.concatenate([v_x, v_y], axis=-1)
    return spatial * u


if __name__ == "__main__":
    B, H, W, C = 2, 16, 16, 32   # img_size = (16, 16), dim = 32

    key = jax.random.PRNGKey(0)
    kx, k1, k2, k3, k4, k5, k6 = jax.random.split(key, 7)
    x = jax.random.normal(kx, (B, H, W, C), jnp.float32)
    params = {
        "ln_g": 1.0 + 0.1 * jax.random.normal(k1, (C // 2,), jnp.float32),
        "ln_b": 0.1 * jax.random.normal(k2, (C // 2,), jnp.float32),
        "x_w": 0.1 * jax.random.normal(k3, (W, W), jnp.float32),   # (out, in)
        "x_b": 0.1 * jax.random.normal(k4, (W,), jnp.float32),
        "y_w": 0.1 * jax.random.normal(k5, (H, H), jnp.float32),   # (out, in)
        "y_b": 0.1 * jax.random.normal(k6, (H,), jnp.float32),
    }

    fwd = jax.jit(ssgu_forward)
    out = fwd(x, params)
    jax.block_until_ready(out)

    assert out.shape == (B, H, W, C // 2), out.shape
    assert bool(jnp.all(jnp.isfinite(out)))

    ref = ssgu_reference(x, params)
    err = float(jnp.max(jnp.abs(out - ref)))
    assert err < 2e-2, f"max abs error vs reference: {err}"

    print("KERNEL_OK")
</pallas_src>

<mosaic_0001>
module attributes {stable_mosaic.version = 11 : i64} {
  func.func @_ssgu_kernel(%arg0: memref<32x256xf32, #tpu.memory_space<vmem>>, %arg1: memref<32x256xf32, #tpu.memory_space<vmem>>, %arg2: memref<256x256xbf16, #tpu.memory_space<vmem>>, %arg3: memref<256x256xbf16, #tpu.memory_space<vmem>>, %arg4: memref<32x32xbf16, #tpu.memory_space<vmem>>, %arg5: memref<1x256xf32, #tpu.memory_space<vmem>>, %arg6: memref<32x256xf32, #tpu.memory_space<vmem>>, %arg7: memref<32x256xf32, #tpu.memory_space<vmem>>) attributes {dimension_semantics = [], scalar_prefetch = 0 : i64, scratch_operands = 0 : i64, tpu.core_type = #tpu.core_type<tc>} {
    %c0 = arith.constant 0 : index
    %c0_0 = arith.constant 0 : index
    %0 = vector.load %arg0[%c0, %c0_0] : memref<32x256xf32, #tpu.memory_space<vmem>>, vector<32x256xf32>
    %c0_1 = arith.constant 0 : index
    %c0_2 = arith.constant 0 : index
    %1 = vector.load %arg1[%c0_1, %c0_2] : memref<32x256xf32, #tpu.memory_space<vmem>>, vector<32x256xf32>
    %c0_3 = arith.constant 0 : index
    %c0_4 = arith.constant 0 : index
    %2 = vector.load %arg2[%c0_3, %c0_4] : memref<256x256xbf16, #tpu.memory_space<vmem>>, vector<256x256xbf16>
    %3 = arith.truncf %1 : vector<32x256xf32> to vector<32x256xbf16>
    %4 = arith.extf %3 : vector<32x256xbf16> to vector<32x256xf32>
    %5 = arith.subf %1, %4 : vector<32x256xf32>
    %6 = arith.truncf %5 : vector<32x256xf32> to vector<32x256xbf16>
    %cst = arith.constant dense<0.000000e+00> : vector<32x256xf32>
    %7 = tpu.matmul %3, %2, %cst {dimension_numbers = #tpu.dot_dimension_numbers<[1], [0], [0], [1], [0, 0, 1, 1], [], []>} : vector<32x256xbf16>, vector<256x256xbf16>, vector<32x256xf32> -> vector<32x256xf32>
    %cst_5 = arith.constant dense<0.000000e+00> : vector<32x256xf32>
    %8 = tpu.matmul %6, %2, %cst_5 {dimension_numbers = #tpu.dot_dimension_numbers<[1], [0], [0], [1], [0, 0, 1, 1], [], []>} : vector<32x256xbf16>, vector<256x256xbf16>, vector<32x256xf32> -> vector<32x256xf32>
    %9 = arith.addf %7, %8 : vector<32x256xf32>
    %cst_6 = arith.constant 6.250000e-02 : f32
    %10 = vector.broadcast %cst_6 : f32 to vector<32x256xf32>
    %11 = arith.mulf %9, %10 : vector<32x256xf32>
    %12 = arith.subf %1, %11 : vector<32x256xf32>
    %13 = arith.mulf %12, %12 : vector<32x256xf32>
    %14 = arith.truncf %13 : vector<32x256xf32> to vector<32x256xbf16>
    %15 = arith.extf %14 : vector<32x256xbf16> to vector<32x256xf32>
    %16 = arith.subf %13, %15 : vector<32x256xf32>
    %17 = arith.truncf %16 : vector<32x256xf32> to vector<32x256xbf16>
    %cst_7 = arith.constant dense<0.000000e+00> : vector<32x256xf32>
    %18 = tpu.matmul %14, %2, %cst_7 {dimension_numbers = #tpu.dot_dimension_numbers<[1], [0], [0], [1], [0, 0, 1, 1], [], []>} : vector<32x256xbf16>, vector<256x256xbf16>, vector<32x256xf32> -> vector<32x256xf32>
    %cst_8 = arith.constant dense<0.000000e+00> : vector<32x256xf32>
    %19 = tpu.matmul %17, %2, %cst_8 {dimension_numbers = #tpu.dot_dimension_numbers<[1], [0], [0], [1], [0, 0, 1, 1], [], []>} : vector<32x256xbf16>, vector<256x256xbf16>, vector<32x256xf32> -> vector<32x256xf32>
    %20 = arith.addf %18, %19 : vector<32x256xf32>
    %cst_9 = arith.constant 6.250000e-02 : f32
    %21 = vector.broadcast %cst_9 : f32 to vector<32x256xf32>
    %22 = arith.mulf %20, %21 : vector<32x256xf32>
    %cst_10 = arith.constant 9.99999974E-6 : f32
    %23 = vector.broadcast %cst_10 : f32 to vector<32x256xf32>
    %24 = arith.addf %22, %23 : vector<32x256xf32>
    %25 = math.rsqrt %24 : vector<32x256xf32>
    %26 = arith.mulf %12, %25 : vector<32x256xf32>
    %27 = arith.truncf %26 : vector<32x256xf32> to vector<32x256xbf16>
    %c0_11 = arith.constant 0 : index
    %c0_12 = arith.constant 0 : index
    %28 = vector.load %arg3[%c0_11, %c0_12] : memref<256x256xbf16, #tpu.memory_space<vmem>>, vector<256x256xbf16>
    %cst_13 = arith.constant dense<0.000000e+00> : vector<32x256xf32>
    %29 = tpu.matmul %27, %28, %cst_13 {dimension_numbers = #tpu.dot_dimension_numbers<[1], [0], [0], [1], [0, 0, 1, 1], [], []>} : vector<32x256xbf16>, vector<256x256xbf16>, vector<32x256xf32> -> vector<32x256xf32>
    %c0_14 = arith.constant 0 : index
    %c0_15 = arith.constant 0 : index
    %30 = vector.load %arg4[%c0_14, %c0_15] : memref<32x32xbf16, #tpu.memory_space<vmem>>, vector<32x32xbf16>
    %cst_16 = arith.constant dense<0.000000e+00> : vector<32x256xf32>
    %31 = tpu.matmul %30, %27, %cst_16 {dimension_numbers = #tpu.dot_dimension_numbers<[1], [0], [0], [1], [0, 0, 1, 1], [], []>} : vector<32x32xbf16>, vector<32x256xbf16>, vector<32x256xf32> -> vector<32x256xf32>
    %c0_17 = arith.constant 0 : index
    %c0_18 = arith.constant 0 : index
    %32 = vector.load %arg5[%c0_17, %c0_18] : memref<1x256xf32, #tpu.memory_space<vmem>>, vector<1x256xf32>
    %33 = vector.broadcast %32 : vector<1x256xf32> to vector<32x256xf32>
    %34 = arith.mulf %31, %33 : vector<32x256xf32>
    %35 = arith.addf %29, %34 : vector<32x256xf32>
    %c0_19 = arith.constant 0 : index
    %c0_20 = arith.constant 0 : index
    %36 = vector.load %arg6[%c0_19, %c0_20] : memref<32x256xf32, #tpu.memory_space<vmem>>, vector<32x256xf32>
    %37 = arith.addf %35, %36 : vector<32x256xf32>
    %38 = arith.mulf %37, %0 : vector<32x256xf32>
    %c0_21 = arith.constant 0 : index
    %c0_22 = arith.constant 0 : index
    %39 = vector.load %arg7[%c0_21, %c0_22] : memref<32x256xf32, #tpu.memory_space<vmem>>, vector<32x256xf32>
    tpu.vector_store %arg7[%c0_21, %c0_22], %38 {strides = array<i32>} : memref<32x256xf32, #tpu.memory_space<vmem>>, vector<32x256xf32>,
    return
  }
}

</mosaic_0001>

<llo_original>
// kernel: tile.23
$region0: #{tile.23}
  #allocation0 [shape = 's32[1]{0}', space=sflag, size = 0x4, scoped, tag = 'scoped memory for tile.23']
  %s0 = inlined_call_operand.vmem [shape: f32[16], index: 0, kind: input, shape index: {}]
  %s1 = inlined_call_operand.vmem [shape: f32[16,16], index: 1, kind: output, shape index: {}]
  // Predicated region
  $region2: #{tile.23} parent=0 // pred_check
    _
  $region3: #{tile.23} parent=0 // pred_check_branch
    %3 = sbr.rel (0) target = $region5
  $region4: #{tile.23} parent=0 // pred_region
    _
  $region5: #{tile.23} parent=0 // pred_fallthru
    _
  %v4 = vld [vmem:[%s0] ss:$0 sm:$0xff]
  %5 = vst [vmem:[%s1] sm:$0xff] %v4
  %s6 = scalar_lea.vmem %s1, 8
  %7 = vst [vmem:[%s6] sm:$0xff] %v4

// kernel: tile.24
$region0: #{tile.24}
  %s0 = inlined_call_operand.vmem [shape: f32[16,16], index: 0, kind: input, shape index: {}]
  %s1 = inlined_call_operand.vmem [shape: f32[1,256], index: 1, kind: output, shape index: {}]
  $region1: #{tile.24} parent=0
    #allocation0 [shape = 'u8[8192]{0}', space=vmem, size = 0x2000, scoped, tag = 'scoped mem for output reshape']
    %s2 = smov 3
    %v3 = vld [vmem:[%s0] ss:$8 sm:%s2]
    %vm4 = vcmask 130048
    %5 = vst.msk [vmem:[#allocation0] ss:$8 sm:$0x3] %vm4, %v3
    %s6 = scalar_lea.vmem %s0, 7
    %s7 = smov 3
    %v8 = vld [vmem:[%s6] ss:$8 sm:%s7]
    %9 = vrot.lane.b32.xlu0 %v8, 112
    %v10 = vpop.permute.xlu0 %9
    %vm11 = vcmask 1048448
    %12 = vst.msk [vmem:[#allocation0] ss:$8 sm:$0x3] %vm11, %v10
    %s13 = scalar_lea.vmem %s0, 6
    %s14 = smov 3
    %v15 = vld [vmem:[%s13] ss:$8 sm:%s14]
    %16 = vrot.lane.b32.xlu0 %v15, 96
    %v17 = vpop.permute.xlu0 %16
    %vm18 = vcmask 917248
    %19 = vst.msk [vmem:[#allocation0] ss:$8 sm:$0x3] %vm18, %v17
    %s20 = scalar_lea.vmem %s0, 5
    %s21 = smov 3
    %v22 = vld [vmem:[%s20] ss:$8 sm:%s21]
    %23 = vrot.lane.b32.xlu0 %v22, 80
    %v24 = vpop.permute.xlu0 %23
    %vm25 = vcmask 786048
    %26 = vst.msk [vmem:[#allocation0] ss:$8 sm:$0x3] %vm25, %v24
    %s27 = scalar_lea.vmem %s0, 4
    %s28 = smov 3
    %v29 = vld [vmem:[%s27] ss:$8 sm:%s28]
    %30 = vrot.lane.b32.xlu0 %v29, 64
    %v31 = vpop.permute.xlu0 %30
    %vm32 = vcmask 654848
    %33 = vst.msk [vmem:[#allocation0] ss:$8 sm:$0x3] %vm32, %v31
    %s34 = scalar_lea.vmem %s0, 3
    %s35 = smov 3
    %v36 = vld [vmem:[%s34] ss:$8 sm:%s35]
    %37 = vrot.lane.b32.xlu0 %v36, 48
    %v38 = vpop.permute.xlu0 %37
    %vm39 = vcmask 523648
    %40 = vst.msk [vmem:[#allocation0] ss:$8 sm:$0x3] %vm39, %v38
    %s41 = scalar_lea.vmem %s0, 2
    %s42 = smov 3
    %v43 = vld [vmem:[%s41] ss:$8 sm:%s42]
    %44 = vrot.lane.b32.xlu0 %v43, 32
    %v45 = vpop.permute.xlu0 %44
    %vm46 = vcmask 392448
    %47 = vst.msk [vmem:[#allocation0] ss:$8 sm:$0x3] %vm46, %v45
    %s48 = scalar_lea.vmem %s0, 1
    %s49 = smov 3
    %v50 = vld [vmem:[%s48] ss:$8 sm:%s49]
    %51 = vrot.lane.b32.xlu0 %v50, 16
    %v52 = vpop.permute.xlu0 %51
    %vm53 = vcmask 261248
    %54 = vst.msk [vmem:[#allocation0] ss:$8 sm:$0x3] %vm53, %v52
    %s56 = sshll.u32 1, 1
    %s57 = ssub.s32 %s56, 1
    %v59 = vld [vmem:[#allocation0] sm:%s57]
    %s60 = sshll.u32 1, 1
    %s61 = ssub.s32 %s60, 1
    %62 = vst [vmem:[%s1] sm:%s61] %v59
    %s63 = scalar_lea.vmem [#allocation0], 8
    %v64 = vld [vmem:[%s63] sm:%s57]
    %s65 = sshll.u32 1, 1
    %s66 = ssub.s32 %s65, 1
    %s67 = scalar_lea.vmem %s1, 1
    %68 = vst [vmem:[%s67] sm:%s66] %v64

// kernel: ssgu_forward.1
$region0: #{ssgu_forward.1}
  #allocation0 [shape = 'u32[]', space=smem, size = 0x4, offset = 0x4, fixed_abs, tag = 'smem constant byte address 0x4 - core index']
  #allocation1 [shape = 'u32[144,128]{1,0:T(1,128)}', space=vmem, size = 0x12000, scoped, tag = 'internal scratch']
  %s0 = inlined_call_operand.vmem [shape: f32[32,256], index: 0, kind: input, shape index: {}]
  %s1 = inlined_call_operand.vmem [shape: f32[32,256], index: 1, kind: input, shape index: {}]
  %s2 = inlined_call_operand.vmem [shape: bf16[256,256], index: 2, kind: input, shape index: {}]
  %s3 = inlined_call_operand.vmem [shape: bf16[256,256], index: 3, kind: input, shape index: {}]
  %s4 = inlined_call_operand.vmem [shape: bf16[32,32], index: 4, kind: input, shape index: {}]
  %s5 = inlined_call_operand.vmem [shape: f32[1,256], index: 5, kind: input, shape index: {}]
  %s6 = inlined_call_operand.vmem [shape: f32[32,256], index: 6, kind: input, shape index: {}]
  %s7 = inlined_call_operand.vmem [shape: f32[32,256], index: 7, kind: output, shape index: {}]
  %s8 = sld [smem:[#allocation0]]
  $region38: #{ssgu_forward.1} parent=0
    _
  %s10 = ssub.s32 1, %s8
  %s11 = scalar_select 0, %s10, %s8
  // Predicated region
  $region2: #{ssgu_forward.1} parent=0 // pred_check
    _
  $region3: #{ssgu_forward.1} parent=0 // pred_check_branch
    %13 = sbr.rel (0) target = $region5
  $region4: #{ssgu_forward.1} parent=0 // pred_region
    _
  $region5: #{ssgu_forward.1} parent=0 // pred_fallthru
    _
  // Predicated region
  $region6: #{ssgu_forward.1} parent=0 // pred_check
    _
  $region7: #{ssgu_forward.1} parent=0 // pred_check_branch
    %15 = sbr.rel (0) target = $region9
  $region8: #{ssgu_forward.1} parent=0 // pred_region
    _
  $region9: #{ssgu_forward.1} parent=0 // pred_fallthru
    _
  // Predicated region
  $region10: #{ssgu_forward.1} parent=0 // pred_check
    _
  $region11: #{ssgu_forward.1} parent=0 // pred_check_branch
    %17 = sbr.rel (0) target = $region13
  $region12: #{ssgu_forward.1} parent=0 // pred_region
    _
  $region13: #{ssgu_forward.1} parent=0 // pred_fallthru
    _
  // Predicated region
  $region14: #{ssgu_forward.1} parent=0 // pred_check
    _
  $region15: #{ssgu_forward.1} parent=0 // pred_check_branch
    %19 = sbr.rel (0) target = $region17
  $region16: #{ssgu_forward.1} parent=0 // pred_region
    _
  $region17: #{ssgu_forward.1} parent=0 // pred_fallthru
    _
  // Predicated region
  $region18: #{ssgu_forward.1} parent=0 // pred_check
    _
  $region19: #{ssgu_forward.1} parent=0 // pred_check_branch
    %21 = sbr.rel (0) target = $region21
  $region20: #{ssgu_forward.1} parent=0 // pred_region
    _
  $region21: #{ssgu_forward.1} parent=0 // pred_fallthru
    _
  // Predicated region
  $region22: #{ssgu_forward.1} parent=0 // pred_check
    _
  $region23: #{ssgu_forward.1} parent=0 // pred_check_branch
    %23 = sbr.rel (0) target = $region25
  $region24: #{ssgu_forward.1} parent=0 // pred_region
    _
  $region25: #{ssgu_forward.1} parent=0 // pred_fallthru
    _
  // Predicated region
  $region26: #{ssgu_forward.1} parent=0 // pred_check
    _
  $region27: #{ssgu_forward.1} parent=0 // pred_check_branch
    %25 = sbr.rel (0) target = $region29
  $region28: #{ssgu_forward.1} parent=0 // pred_region
    _
  $region29: #{ssgu_forward.1} parent=0 // pred_fallthru
    _
  %v27 = vld [vmem:[%s0] sm:$0xff]
  %v28 = vld [vmem:[%s0 + $0x8] sm:$0xff]
  %v29 = vld [vmem:[%s0 + $0x10] sm:$0xff]
  %v30 = vld [vmem:[%s0 + $0x18] sm:$0xff]
  %v31 = vld [vmem:[%s0 + $0x20] sm:$0xff]
  %v32 = vld [vmem:[%s0 + $0x28] sm:$0xff]
  %v33 = vld [vmem:[%s0 + $0x30] sm:$0xff]
  %v34 = vld [vmem:[%s0 + $0x38] sm:$0xff]
  %v35 = vld [vmem:[%s1] sm:$0xff]
  %v36 = vld [vmem:[%s1 + $0x8] sm:$0xff]
  %v37 = vld [vmem:[%s1 + $0x10] sm:$0xff]
  %v38 = vld [vmem:[%s1 + $0x18] sm:$0xff]
  %v39 = vld [vmem:[%s1 + $0x20] sm:$0xff]
  %v40 = vld [vmem:[%s1 + $0x28] sm:$0xff]
  %v41 = vld [vmem:[%s1 + $0x30] sm:$0xff]
  %v42 = vld [vmem:[%s1 + $0x38] sm:$0xff]
  %v43 = vld [vmem:[%s2] sm:$0xff]
  %v44 = vld [vmem:[%s2 + $0x8] sm:$0xff]
  %v45 = vld [vmem:[%s2 + $0x10] sm:$0xff]
  %v46 = vld [vmem:[%s2 + $0x18] sm:$0xff]
  %v47 = vld [vmem:[%s2 + $0x20] sm:$0xff]
  %v48 = vld [vmem:[%s2 + $0x28] sm:$0xff]
  %v49 = vld [vmem:[%s2 + $0x30] sm:$0xff]
  %v50 = vld [vmem:[%s2 + $0x38] sm:$0xff]
  %v51 = vld [vmem:[%s2 + $0x40] sm:$0xff]
  %v52 = vld [vmem:[%s2 + $0x48] sm:$0xff]
  %v53 = vld [vmem:[%s2 + $0x50] sm:$0xff]
  %v54 = vld [vmem:[%s2 + $0x58] sm:$0xff]
  %v55 = vld [vmem:[%s2 + $0x60] sm:$0xff]
  %v56 = vld [vmem:[%s2 + $0x68] sm:$0xff]
  %v57 = vld [vmem:[%s2 + $0x70] sm:$0xff]
  %v58 = vld [vmem:[%s2 + $0x78] sm:$0xff]
  %v59 = vld [vmem:[%s2 + $0x80] sm:$0xff]
  %v60 = vld [vmem:[%s2 + $0x88] sm:$0xff]
  %v61 = vld [vmem:[%s2 + $0x90] sm:$0xff]
  %v62 = vld [vmem:[%s2 + $0x98] sm:$0xff]
  %v63 = vld [vmem:[%s2 + $0xa0] sm:$0xff]
  %v64 = vld [vmem:[%s2 + $0xa8] sm:$0xff]
  %v65 = vld [vmem:[%s2 + $0xb0] sm:$0xff]
  %v66 = vld [vmem:[%s2 + $0xb8] sm:$0xff]
  %v67 = vld [vmem:[%s2 + $0xc0] sm:$0xff]
  %v68 = vld [vmem:[%s2 + $0xc8] sm:$0xff]
  %v69 = vld [vmem:[%s2 + $0xd0] sm:$0xff]
  %v70 = vld [vmem:[%s2 + $0xd8] sm:$0xff]
  %v71 = vld [vmem:[%s2 + $0xe0] sm:$0xff]
  %v72 = vld [vmem:[%s2 + $0xe8] sm:$0xff]
  %v73 = vld [vmem:[%s2 + $0xf0] sm:$0xff]
  %v74 = vld [vmem:[%s2 + $0xf8] sm:$0xff]
  %v75 = vpack.c.bf16 %v37, %v35
  %v76 = vpack.c.bf16 %v38, %v36
  %v77 = vpack.c.bf16 %v41, %v39
  %v78 = vpack.c.bf16 %v42, %v40
  %v79 = vunpack.c.l.bf16 %v75
  %v80 = vunpack.c.l.bf16 %v76
  %v81 = vunpack.c.h.bf16 %v75
  %v82 = vunpack.c.h.bf16 %v76
  %v83 = vunpack.c.l.bf16 %v77
  %v84 = vunpack.c.l.bf16 %v78
  %v85 = vunpack.c.h.bf16 %v77
  %v86 = vunpack.c.h.bf16 %v78
  %v87 = vsub.f32 %v35, %v79
  %v88 = vsub.f32 %v36, %v80
  %v89 = vsub.f32 %v37, %v81
  %v90 = vsub.f32 %v38, %v82
  %v91 = vsub.f32 %v39, %v83
  %v92 = vsub.f32 %v40, %v84
  %v93 = vsub.f32 %v41, %v85
  %v94 = vsub.f32 %v42, %v86
  %v95 = vpack.c.bf16 %v89, %v87
  %v96 = vpack.c.bf16 %v90, %v88
  %v97 = vpack.c.bf16 %v93, %v91
  %v98 = vpack.c.bf16 %v94, %v92
  %v131 = vunpack.c.l.b16 %v43
  %v132 = vunpack.c.h.b16 %v43
  %v133 = vunpack.c.l.b16 %v44
  %v134 = vunpack.c.h.b16 %v44
  %v135 = vunpack.c.l.b16 %v45
  %v136 = vunpack.c.h.b16 %v45
  %v137 = vunpack.c.l.b16 %v46
  %v138 = vunpack.c.h.b16 %v46
  %v139 = vunpack.c.l.b16 %v47
  %v140 = vunpack.c.h.b16 %v47
  %v141 = vunpack.c.l.b16 %v48
  %v142 = vunpack.c.h.b16 %v48
  %v143 = vunpack.c.l.b16 %v49
  %v144 = vunpack.c.h.b16 %v49
  %v145 = vunpack.c.l.b16 %v50
  %v146 = vunpack.c.h.b16 %v50
  %v147 = vunpack.c.l.b16 %v51
  %v148 = vunpack.c.h.b16 %v51
  %v149 = vunpack.c.l.b16 %v52
  %v150 = vunpack.c.h.b16 %v52
  %v151 = vunpack.c.l.b16 %v53
  %v152 = vunpack.c.h.b16 %v53
  %v153 = vunpack.c.l.b16 %v54
  %v154 = vunpack.c.h.b16 %v54
  %v155 = vunpack.c.l.b16 %v55
  %v156 = vunpack.c.h.b16 %v55
  %v157 = vunpack.c.l.b16 %v56
  %v158 = vunpack.c.h.b16 %v56
  %v159 = vunpack.c.l.b16 %v57
  %v160 = vunpack.c.h.b16 %v57
  %v161 = vunpack.c.l.b16 %v58
  %v162 = vunpack.c.h.b16 %v58
  %v163 = vunpack.c.l.b16 %v59
  %v164 = vunpack.c.h.b16 %v59
  %v165 = vunpack.c.l.b16 %v60
  %v166 = vunpack.c.h.b16 %v60
  %v167 = vunpack.c.l.b16 %v61
  %v168 = vunpack.c.h.b16 %v61
  %v169 = vunpack.c.l.b16 %v62
  %v170 = vunpack.c.h.b16 %v62
  %v171 = vunpack.c.l.b16 %v63
  %v172 = vunpack.c.h.b16 %v63
  %v173 = vunpack.c.l.b16 %v64
  %v174 = vunpack.c.h.b16 %v64
  %v175 = vunpack.c.l.b16 %v65
  %v176 = vunpack.c.h.b16 %v65
  %v177 = vunpack.c.l.b16 %v66
  %v178 = vunpack.c.h.b16 %v66
  %v179 = vunpack.c.l.b16 %v67
  %v180 = vunpack.c.h.b16 %v67
  %v181 = vunpack.c.l.b16 %v68
  %v182 = vunpack.c.h.b16 %v68
  %v183 = vunpack.c.l.b16 %v69
  %v184 = vunpack.c.h.b16 %v69
  %v185 = vunpack.c.l.b16 %v70
  %v186 = vunpack.c.h.b16 %v70
  %v187 = vunpack.c.l.b16 %v71
  %v188 = vunpack.c.h.b16 %v71
  %v189 = vunpack.c.l.b16 %v72
  %v190 = vunpack.c.h.b16 %v72
  %v191 = vunpack.c.l.b16 %v73
  %v192 = vunpack.c.h.b16 %v73
  %v193 = vunpack.c.l.b16 %v74
  %v194 = vunpack.c.h.b16 %v74
  %v195 = vpack.c.b16 %v133, %v131
  %v196 = vpack.c.b16 %v134, %v132
  %v197 = vpack.c.b16 %v137, %v135
  %v198 = vpack.c.b16 %v138, %v136
  %v199 = vpack.c.b16 %v141, %v139
  %v200 = vpack.c.b16 %v142, %v140
  %v201 = vpack.c.b16 %v145, %v143
  %v202 = vpack.c.b16 %v146, %v144
  %v203 = vpack.c.b16 %v149, %v147
  %v204 = vpack.c.b16 %v150, %v148
  %v205 = vpack.c.b16 %v153, %v151
  %v206 = vpack.c.b16 %v154, %v152
  %v207 = vpack.c.b16 %v157, %v155
  %v208 = vpack.c.b16 %v158, %v156
  %v209 = vpack.c.b16 %v161, %v159
  %v210 = vpack.c.b16 %v162, %v160
  %v211 = vpack.c.b16 %v165, %v163
  %v212 = vpack.c.b16 %v166, %v164
  %v213 = vpack.c.b16 %v169, %v167
  %v214 = vpack.c.b16 %v170, %v168
  %v215 = vpack.c.b16 %v173, %v171
  %v216 = vpack.c.b16 %v174, %v172
  %v217 = vpack.c.b16 %v177, %v175
  %v218 = vpack.c.b16 %v178, %v176
  %v219 = vpack.c.b16 %v181, %v179
  %v220 = vpack.c.b16 %v182, %v180
  %v221 = vpack.c.b16 %v185, %v183
  %v222 = vpack.c.b16 %v186, %v184
  %v223 = vpack.c.b16 %v189, %v187
  %v224 = vpack.c.b16 %v190, %v188
  %v225 = vpack.c.b16 %v193, %v191
  %v226 = vpack.c.b16 %v194, %v192
  %259 = vmatprep.subr.bf16.mxu0 %v210
  %260 = vmatpush1.bf16.msra.mxu0 %v209
  %261 = vmatprep.subr.bf16.mxu0 %v208
  %262 = vmatpush1.bf16.msra.mxu0 %v207
  %263 = vmatprep.subr.bf16.mxu0 %v206
  %264 = vmatpush1.bf16.msra.mxu0 %v205
  %265 = vmatprep.subr.bf16.mxu0 %v204
  %266 = vmatpush1.bf16.msra.mxu0 %v203
  %267 = vmatprep.subr.bf16.mxu0 %v202
  %268 = vmatpush1.bf16.msra.mxu0 %v201
  %269 = vmatprep.subr.bf16.mxu0 %v200
  %270 = vmatpush1.bf16.msra.mxu0 %v199
  %271 = vmatprep.subr.bf16.mxu0 %v198
  %272 = vmatpush1.bf16.msra.mxu0 %v197
  %273 = vmatprep.subr.bf16.mxu0 %v196
  %274 = vmatpush1.bf16.msra.mxu0 %v195
  %275 = vmatprep.subr.bf16.mxu0 %v226
  %276 = vmatpush2.bf16.msra.mxu0 %v225
  %277 = vmatprep.subr.bf16.mxu0 %v224
  %278 = vmatpush2.bf16.msra.mxu0 %v223
  %279 = vmatprep.subr.bf16.mxu0 %v222
  %280 = vmatpush2.bf16.msra.mxu0 %v221
  %281 = vmatprep.subr.bf16.mxu0 %v220
  %282 = vmatpush2.bf16.msra.mxu0 %v219
  %283 = vmatprep.subr.bf16.mxu0 %v218
  %284 = vmatpush2.bf16.msra.mxu0 %v217
  %285 = vmatprep.subr.bf16.mxu0 %v216
  %286 = vmatpush2.bf16.msra.mxu0 %v215
  %287 = vmatprep.subr.bf16.mxu0 %v214
  %288 = vmatpush2.bf16.msra.mxu0 %v213
  %289 = vmatprep.subr.bf16.mxu0 %v212
  %290 = vmatpush2.bf16.msra.mxu0 %v211
  %291 = vmatprep.mubr.bf16.mxu0 %v96
  %292 = vmatmul.mubr.bf16.gmra.mxu0 %v95
  %v293 = vpop.f32.mrf.mxu0
  %v294 = vadd.f32 0.0, %v293
  %v295 = vpop.f32.mrf.mxu0
  %v296 = vadd.f32 0.0, %v295
  %v297 = vpop.f32.mrf.mxu0
  %v298 = vadd.f32 0.0, %v297
  %v299 = vpop.f32.mrf.mxu0
  %v300 = vadd.f32 0.0, %v299
  %301 = vmatprep.mubr.bf16.mxu0 %v98
  %302 = vmatmul.mubr.bf16.gmra.mxu0 %v97
  %v303 = vpop.f32.mrf.mxu0
  %v304 = vadd.f32 0.0, %v303
  %v305 = vpop.f32.mrf.mxu0
  %v306 = vadd.f32 0.0, %v305
  %v307 = vpop.f32.mrf.mxu0
  %v308 = vadd.f32 0.0, %v307
  %v309 = vpop.f32.mrf.mxu0
  %v310 = vadd.f32 0.0, %v309
  %311 = vdwg.mxu0
  %312 = vmatprep.subr.bf16.mxu0 %v210
  %313 = vmatpush1.bf16.msra.mxu0 %v209
  %314 = vmatprep.subr.bf16.mxu0 %v208
  %315 = vmatpush1.bf16.msra.mxu0 %v207
  %316 = vmatprep.subr.bf16.mxu0 %v206
  %317 = vmatpush1.bf16.msra.mxu0 %v205
  %318 = vmatprep.subr.bf16.mxu0 %v204
  %319 = vmatpush1.bf16.msra.mxu0 %v203
  %320 = vmatprep.subr.bf16.mxu0 %v202
  %321 = vmatpush1.bf16.msra.mxu0 %v201
  %322 = vmatprep.subr.bf16.mxu0 %v200
  %323 = vmatpush1.bf16.msra.mxu0 %v199
  %324 = vmatprep.subr.bf16.mxu0 %v198
  %325 = vmatpush1.bf16.msra.mxu0 %v197
  %326 = vmatprep.subr.bf16.mxu0 %v196
  %327 = vmatpush1.bf16.msra.mxu0 %v195
  %328 = vmatprep.subr.bf16.mxu0 %v226
  %329 = vmatpush2.bf16.msra.mxu0 %v225
  %330 = vmatprep.subr.bf16.mxu0 %v224
  %331 = vmatpush2.bf16.msra.mxu0 %v223
  %332 = vmatprep.subr.bf16.mxu0 %v222
  %333 = vmatpush2.bf16.msra.mxu0 %v221
  %334 = vmatprep.subr.bf16.mxu0 %v220
  %335 = vmatpush2.bf16.msra.mxu0 %v219
  %336 = vmatprep.subr.bf16.mxu0 %v218
  %337 = vmatpush2.bf16.msra.mxu0 %v217
  %338 = vmatprep.subr.bf16.mxu0 %v216
  %339 = vmatpush2.bf16.msra.mxu0 %v215
  %340 = vmatprep.subr.bf16.mxu0 %v214
  %341 = vmatpush2.bf16.msra.mxu0 %v213
  %342 = vmatprep.subr.bf16.mxu0 %v212
  %343 = vmatpush2.bf16.msra.mxu0 %v211
  %344 = vmatprep.mubr.bf16.mxu0 %v76
  %345 = vmatmul.mubr.bf16.gmra.mxu0 %v75
  %v346 = vpop.f32.mrf.mxu0
  %v347 = vadd.f32 %v294, %v346
  %v348 = vpop.f32.mrf.mxu0
  %v349 = vadd.f32 %v296, %v348
  %v350 = vpop.f32.mrf.mxu0
  %v351 = vadd.f32 %v298, %v350
  %v352 = vpop.f32.mrf.mxu0
  %v353 = vadd.f32 %v300, %v352
  %354 = vmatprep.mubr.bf16.mxu0 %v78
  %355 = vmatmul.mubr.bf16.gmra.mxu0 %v77
  %v356 = vpop.f32.mrf.mxu0
  %v357 = vadd.f32 %v304, %v356
  %v358 = vpop.f32.mrf.mxu0
  %v359 = vadd.f32 %v306, %v358
  %v360 = vpop.f32.mrf.mxu0
  %v361 = vadd.f32 %v308, %v360
  %v362 = vpop.f32.mrf.mxu0
  %v363 = vadd.f32 %v310, %v362
  %364 = vdwg.mxu0
  %v365 = vmul.f32 %v347, 0.0625
  %v366 = vmul.f32 %v349, 0.0625
  %v367 = vmul.f32 %v351, 0.0625
  %v368 = vmul.f32 %v353, 0.0625
  %v369 = vmul.f32 %v357, 0.0625
  %v370 = vmul.f32 %v359, 0.0625
  %v371 = vmul.f32 %v361, 0.0625
  %v372 = vmul.f32 %v363, 0.0625
  %v373 = vsub.f32 %v35, %v365
  %v374 = vsub.f32 %v36, %v366
  %v375 = vsub.f32 %v37, %v367
  %v376 = vsub.f32 %v38, %v368
  %v377 = vsub.f32 %v39, %v369
  %v378 = vsub.f32 %v40, %v370
  %v379 = vsub.f32 %v41, %v371
  %v380 = vsub.f32 %v42, %v372
  %v381 = vmul.f32 %v373, %v373
  %v382 = vmul.f32 %v374, %v374
  %v383 = vmul.f32 %v375, %v375
  %v384 = vmul.f32 %v376, %v376
  %v385 = vmul.f32 %v377, %v377
  %v386 = vmul.f32 %v378, %v378
  %v387 = vmul.f32 %v379, %v379
  %v388 = vmul.f32 %v380, %v380
  %v389 = vpack.c.bf16 %v383, %v381
  %v390 = vpack.c.bf16 %v384, %v382
  %v391 = vpack.c.bf16 %v387, %v385
  %v392 = vpack.c.bf16 %v388, %v386
  %v393 = vunpack.c.l.bf16 %v389
  %v394 = vunpack.c.l.bf16 %v390
  %v395 = vunpack.c.h.bf16 %v389
  %v396 = vunpack.c.h.bf16 %v390
  %v397 = vunpack.c.l.bf16 %v391
  %v398 = vunpack.c.l.bf16 %v392
  %v399 = vunpack.c.h.bf16 %v391
  %v400 = vunpack.c.h.bf16 %v392
  %v401 = vsub.f32 %v381, %v393
  %v402 = vsub.f32 %v382, %v394
  %v403 = vsub.f32 %v383, %v395
  %v404 = vsub.f32 %v384, %v396
  %v405 = vsub.f32 %v385, %v397
  %v406 = vsub.f32 %v386, %v398
  %v407 = vsub.f32 %v387, %v399
  %v408 = vsub.f32 %v388, %v400
  %v409 = vpack.c.bf16 %v403, %v401
  %v410 = vpack.c.bf16 %v404, %v402
  %v411 = vpack.c.bf16 %v407, %v405
  %v412 = vpack.c.bf16 %v408, %v406
  %413 = vmatprep.subr.bf16.mxu0 %v210
  %414 = vmatpush1.bf16.msra.mxu0 %v209
  %415 = vmatprep.subr.bf16.mxu0 %v208
  %416 = vmatpush1.bf16.msra.mxu0 %v207
  %417 = vmatprep.subr.bf16.mxu0 %v206
  %418 = vmatpush1.bf16.msra.mxu0 %v205
  %419 = vmatprep.subr.bf16.mxu0 %v204
  %420 = vmatpush1.bf16.msra.mxu0 %v203
  %421 = vmatprep.subr.bf16.mxu0 %v202
  %422 = vmatpush1.bf16.msra.mxu0 %v201
  %423 = vmatprep.subr.bf16.mxu0 %v200
  %424 = vmatpush1.bf16.msra.mxu0 %v199
  %425 = vmatprep.subr.bf16.mxu0 %v198
  %426 = vmatpush1.bf16.msra.mxu0 %v197
  %427 = vmatprep.subr.bf16.mxu0 %v196
  %428 = vmatpush1.bf16.msra.mxu0 %v195
  %429 = vmatprep.subr.bf16.mxu0 %v226
  %430 = vmatpush2.bf16.msra.mxu0 %v225
  %431 = vmatprep.subr.bf16.mxu0 %v224
  %432 = vmatpush2.bf16.msra.mxu0 %v223
  %433 = vmatprep.subr.bf16.mxu0 %v222
  %434 = vmatpush2.bf16.msra.mxu0 %v221
  %435 = vmatprep.subr.bf16.mxu0 %v220
  %436 = vmatpush2.bf16.msra.mxu0 %v219
  %437 = vmatprep.subr.bf16.mxu0 %v218
  %438 = vmatpush2.bf16.msra.mxu0 %v217
  %439 = vmatprep.subr.bf16.mxu0 %v216
  %440 = vmatpush2.bf16.msra.mxu0 %v215
  %441 = vmatprep.subr.bf16.mxu0 %v214
  %442 = vmatpush2.bf16.msra.mxu0 %v213
  %443 = vmatprep.subr.bf16.mxu0 %v212
  %444 = vmatpush2.bf16.msra.mxu0 %v211
  %445 = vmatprep.mubr.bf16.mxu0 %v410
  %446 = vmatmul.mubr.bf16.gmra.mxu0 %v409
  %v447 = vpop.f32.mrf.mxu0
  %v448 = vadd.f32 0.0, %v447
  %v449 = vpop.f32.mrf.mxu0
  %v450 = vadd.f32 0.0, %v449
  %v451 = vpop.f32.mrf.mxu0
  %v452 = vadd.f32 0.0, %v451
  %v453 = vpop.f32.mrf.mxu0
  %v454 = vadd.f32 0.0, %v453
  %455 = vmatprep.mubr.bf16.mxu0 %v412
  %456 = vmatmul.mubr.bf16.gmra.mxu0 %v411
  %v457 = vpop.f32.mrf.mxu0
  %v458 = vadd.f32 0.0, %v457
  %v459 = vpop.f32.mrf.mxu0
  %v460 = vadd.f32 0.0, %v459
  %v461 = vpop.f32.mrf.mxu0
  %v462 = vadd.f32 0.0, %v461
  %v463 = vpop.f32.mrf.mxu0
  %v464 = vadd.f32 0.0, %v463
  %465 = vdwg.mxu0
  %466 = vmatprep.subr.bf16.mxu0 %v210
  %467 = vmatpush1.bf16.msra.mxu0 %v209
  %468 = vmatprep.subr.bf16.mxu0 %v208
  %469 = vmatpush1.bf16.msra.mxu0 %v207
  %470 = vmatprep.subr.bf16.mxu0 %v206
  %471 = vmatpush1.bf16.msra.mxu0 %v205
  %472 = vmatprep.subr.bf16.mxu0 %v204
  %473 = vmatpush1.bf16.msra.mxu0 %v203
  %474 = vmatprep.subr.bf16.mxu0 %v202
  %475 = vmatpush1.bf16.msra.mxu0 %v201
  %476 = vmatprep.subr.bf16.mxu0 %v200
  %477 = vmatpush1.bf16.msra.mxu0 %v199
  %478 = vmatprep.subr.bf16.mxu0 %v198
  %479 = vmatpush1.bf16.msra.mxu0 %v197
  %480 = vmatprep.subr.bf16.mxu0 %v196
  %481 = vmatpush1.bf16.msra.mxu0 %v195
  %482 = vmatprep.subr.bf16.mxu0 %v226
  %483 = vmatpush2.bf16.msra.mxu0 %v225
  %484 = vmatprep.subr.bf16.mxu0 %v224
  %485 = vmatpush2.bf16.msra.mxu0 %v223
  %486 = vmatprep.subr.bf16.mxu0 %v222
  %487 = vmatpush2.bf16.msra.mxu0 %v221
  %488 = vmatprep.subr.bf16.mxu0 %v220
  %489 = vmatpush2.bf16.msra.mxu0 %v219
  %490 = vmatprep.subr.bf16.mxu0 %v218
  %491 = vmatpush2.bf16.msra.mxu0 %v217
  %492 = vmatprep.subr.bf16.mxu0 %v216
  %493 = vmatpush2.bf16.msra.mxu0 %v215
  %494 = vmatprep.subr.bf16.mxu0 %v214
  %495 = vmatpush2.bf16.msra.mxu0 %v213
  %496 = vmatprep.subr.bf16.mxu0 %v212
  %497 = vmatpush2.bf16.msra.mxu0 %v211
  %498 = vmatprep.mubr.bf16.mxu0 %v390
  %499 = vmatmul.mubr.bf16.gmra.mxu0 %v389
  %v500 = vpop.f32.mrf.mxu0
  %v501 = vadd.f32 %v448, %v500
  %v502 = vpop.f32.mrf.mxu0
  %v503 = vadd.f32 %v450, %v502
  %v504 = vpop.f32.mrf.mxu0
  %v505 = vadd.f32 %v452, %v504
  %v506 = vpop.f32.mrf.mxu0
  %v507 = vadd.f32 %v454, %v506
  %508 = vmatprep.mubr.bf16.mxu0 %v392
  %509 = vmatmul.mubr.bf16.gmra.mxu0 %v391
  %v510 = vpop.f32.mrf.mxu0
  %v511 = vadd.f32 %v458, %v510
  %v512 = vpop.f32.mrf.mxu0
  %v513 = vadd.f32 %v460, %v512
  %v514 = vpop.f32.mrf.mxu0
  %v515 = vadd.f32 %v462, %v514
  %v516 = vpop.f32.mrf.mxu0
  %v517 = vadd.f32 %v464, %v516
  %518 = vdwg.mxu0
  %v519 = vmul.f32 %v501, 0.0625
  %v520 = vmul.f32 %v503, 0.0625
  %v521 = vmul.f32 %v505, 0.0625
  %v522 = vmul.f32 %v507, 0.0625
  %v523 = vmul.f32 %v511, 0.0625
  %v524 = vmul.f32 %v513, 0.0625
  %v525 = vmul.f32 %v515, 0.0625
  %v526 = vmul.f32 %v517, 0.0625
  %v527 = vadd.f32 %v519, 1e-05
  %v528 = vadd.f32 %v520, 1e-05
  %v529 = vadd.f32 %v521, 1e-05
  %v530 = vadd.f32 %v522, 1e-05
  %v531 = vadd.f32 %v523, 1e-05
  %v532 = vadd.f32 %v524, 1e-05
  %v533 = vadd.f32 %v525, 1e-05
  %v534 = vadd.f32 %v526, 1e-05
  %v535 = vrsqrt.pop %v527
  %v536 = vrsqrt.pop %v528
  %v537 = vrsqrt.pop %v529
  %v538 = vrsqrt.pop %v530
  %v539 = vrsqrt.pop %v531
  %v540 = vrsqrt.pop %v532
  %v541 = vrsqrt.pop %v533
  %v542 = vrsqrt.pop %v534
  %v543 = vmul.f32 %v373, %v535
  %v544 = vmul.f32 %v374, %v536
  %v545 = vmul.f32 %v375, %v537
  %v546 = vmul.f32 %v376, %v538
  %v547 = vmul.f32 %v377, %v539
  %v548 = vmul.f32 %v378, %v540
  %v549 = vmul.f32 %v379, %v541
  %v550 = vmul.f32 %v380, %v542
  %v551 = vpack.c.bf16 %v545, %v543
  %v552 = vpack.c.bf16 %v546, %v544
  %v553 = vpack.c.bf16 %v549, %v547
  %v554 = vpack.c.bf16 %v550, %v548
  %v555 = vld [vmem:[%s3] sm:$0xff]
  %v556 = vld [vmem:[%s3 + $0x8] sm:$0xff]
  %v557 = vld [vmem:[%s3 + $0x10] sm:$0xff]
  %v558 = vld [vmem:[%s3 + $0x18] sm:$0xff]
  %v559 = vld [vmem:[%s3 + $0x20] sm:$0xff]
  %v560 = vld [vmem:[%s3 + $0x28] sm:$0xff]
  %v561 = vld [vmem:[%s3 + $0x30] sm:$0xff]
  %v562 = vld [vmem:[%s3 + $0x38] sm:$0xff]
  %v563 = vld [vmem:[%s3 + $0x40] sm:$0xff]
  %v564 = vld [vmem:[%s3 + $0x48] sm:$0xff]
  %v565 = vld [vmem:[%s3 + $0x50] sm:$0xff]
  %v566 = vld [vmem:[%s3 + $0x58] sm:$0xff]
  %v567 = vld [vmem:[%s3 + $0x60] sm:$0xff]
  %v568 = vld [vmem:[%s3 + $0x68] sm:$0xff]
  %v569 = vld [vmem:[%s3 + $0x70] sm:$0xff]
  %v570 = vld [vmem:[%s3 + $0x78] sm:$0xff]
  %v571 = vld [vmem:[%s3 + $0x80] sm:$0xff]
  %v572 = vld [vmem:[%s3 + $0x88] sm:$0xff]
  %v573 = vld [vmem:[%s3 + $0x90] sm:$0xff]
  %v574 = vld [vmem:[%s3 + $0x98] sm:$0xff]
  %v575 = vld [vmem:[%s3 + $0xa0] sm:$0xff]
  %v576 = vld [vmem:[%s3 + $0xa8] sm:$0xff]
  %v577 = vld [vmem:[%s3 + $0xb0] sm:$0xff]
  %v578 = vld [vmem:[%s3 + $0xb8] sm:$0xff]
  %v579 = vld [vmem:[%s3 + $0xc0] sm:$0xff]
  %v580 = vld [vmem:[%s3 + $0xc8] sm:$0xff]
  %v581 = vld [vmem:[%s3 + $0xd0] sm:$0xff]
  %v582 = vld [vmem:[%s3 + $0xd8] sm:$0xff]
  %v583 = vld [vmem:[%s3 + $0xe0] sm:$0xff]
  %v584 = vld [vmem:[%s3 + $0xe8] sm:$0xff]
  %v585 = vld [vmem:[%s3 + $0xf0] sm:$0xff]
  %v586 = vld [vmem:[%s3 + $0xf8] sm:$0xff]
  %v587 = vld [vmem:[%s4] sm:$0xf]
  %v588 = vld [vmem:[%s4 + $0x4] sm:$0xf]
  %v589 = vld [vmem:[%s4 + $0x8] sm:$0xf]
  %v590 = vld [vmem:[%s4 + $0xc] sm:$0xf]
  %v595 = vunpack.c.l.b16 %v587
  %v596 = vunpack.c.l.b16 %v588
  %v597 = vunpack.c.l.b16 %v589
  %v598 = vunpack.c.l.b16 %v590
  %v599 = vpack.c.b16 %v596, %v595
  %v600 = vpack.c.b16 %v598, %v597
  %vm601 = vcmask 261120
  %v603 = vsel %vm601, %v599, 0
  %v606 = vsel %vm601, %v600, 0
  %608 = vmatprep.subr.bf16.mxu0 0
  %609 = vmatpush1.bf16.msra.mxu0 0
  %610 = vmatprep.subr.bf16.mxu0 0
  %611 = vmatpush1.bf16.msra.mxu0 0
  %612 = vmatprep.subr.bf16.mxu0 0
  %613 = vmatpush1.bf16.msra.mxu0 0
  %614 = vmatprep.subr.bf16.mxu0 0
  %615 = vmatpush1.bf16.msra.mxu0 0
  %616 = vmatprep.subr.bf16.mxu0 0
  %617 = vmatpush1.bf16.msra.mxu0 0
  %618 = vmatprep.subr.bf16.mxu0 0
  %619 = vmatpush1.bf16.msra.mxu0 0
  %620 = vmatprep.subr.bf16.mxu0 %v554
  %621 = vmatpush1.bf16.msra.mxu0 %v553
  %622 = vmatprep.subr.bf16.mxu0 %v552
  %623 = vmatpush1.bf16.msra.mxu0 %v551
  %624 = vmatprep.subr.bf16.mxu0 0
  %625 = vmatpush2.bf16.msra.mxu0 0
  %626 = vmatprep.subr.bf16.mxu0 0
  %627 = vmatpush2.bf16.msra.mxu0 0
  %628 = vmatprep.subr.bf16.mxu0 0
  %629 = vmatpush2.bf16.msra.mxu0 0
  %630 = vmatprep.subr.bf16.mxu0 0
  %631 = vmatpush2.bf16.msra.mxu0 0
  %632 = vmatprep.subr.bf16.mxu0 0
  %633 = vmatpush2.bf16.msra.mxu0 0
  %634 = vmatprep.subr.bf16.mxu0 0
  %635 = vmatpush2.bf16.msra.mxu0 0
  %636 = vmatprep.subr.bf16.mxu0 0
  %637 = vmatpush2.bf16.msra.mxu0 0
  %638 = vmatprep.subr.bf16.mxu0 0
  %639 = vmatpush2.bf16.msra.mxu0 0
  %640 = vmatprep.mubr.bf16.mxu0 0
  %641 = vmatmul.mubr.bf16.gmra.mxu0 %v603
  %v642 = vpop.f32.mrf.mxu0
  %v643 = vadd.f32 0.0, %v642
  %v644 = vpop.f32.mrf.mxu0
  %v645 = vadd.f32 0.0, %v644
  %v646 = vpop.f32.mrf.mxu0
  %v647 = vadd.f32 0.0, %v646
  %v648 = vpop.f32.mrf.mxu0
  %v649 = vadd.f32 0.0, %v648
  %650 = vmatprep.mubr.bf16.mxu0 0
  %651 = vmatmul.mubr.bf16.gmra.mxu0 %v606
  %v652 = vpop.f32.mrf.mxu0
  %v653 = vadd.f32 0.0, %v652
  %v654 = vpop.f32.mrf.mxu0
  %v655 = vadd.f32 0.0, %v654
  %v656 = vpop.f32.mrf.mxu0
  %v657 = vadd.f32 0.0, %v656
  %v658 = vpop.f32.mrf.mxu0
  %v659 = vadd.f32 0.0, %v658
  %660 = vdwg.mxu0
  %v661 = vld [vmem:[%s5] sm:$0x3]
  %v663 = vlaneseq
  %v664 = vshrl.u32 %v663, 7
  %v665 = vsub.s32 0, %v664
  %v666 = vrot.slane %v661, %v665
  %v667 = vlaneseq
  %v668 = vshrl.u32 %v667, 7
  %v669 = vsub.s32 1, %v668
  %v670 = vrot.slane %v661, %v669
  %v673 = vmul.f32 %v643, %v666
  %v674 = vmul.f32 %v645, %v670
  %v675 = vmul.f32 %v647, %v666
  %v676 = vmul.f32 %v649, %v670
  %v677 = vmul.f32 %v653, %v666
  %v678 = vmul.f32 %v655, %v670
  %v679 = vmul.f32 %v657, %v666
  %v680 = vmul.f32 %v659, %v670
  %v713 = vunpack.c.l.b16 %v555
  %v714 = vunpack.c.h.b16 %v555
  %v715 = vunpack.c.l.b16 %v556
  %v716 = vunpack.c.h.b16 %v556
  %v717 = vunpack.c.l.b16 %v557
  %v718 = vunpack.c.h.b16 %v557
  %v719 = vunpack.c.l.b16 %v558
  %v720 = vunpack.c.h.b16 %v558
  %v721 = vunpack.c.l.b16 %v559
  %v722 = vunpack.c.h.b16 %v559
  %v723 = vunpack.c.l.b16 %v560
  %v724 = vunpack.c.h.b16 %v560
  %v725 = vunpack.c.l.b16 %v561
  %v726 = vunpack.c.h.b16 %v561
  %v727 = vunpack.c.l.b16 %v562
  %v728 = vunpack.c.h.b16 %v562
  %v729 = vunpack.c.l.b16 %v563
  %v730 = vunpack.c.h.b16 %v563
  %v731 = vunpack.c.l.b16 %v564
  %v732 = vunpack.c.h.b16 %v564
  %v733 = vunpack.c.l.b16 %v565
  %v734 = vunpack.c.h.b16 %v565
  %v735 = vunpack.c.l.b16 %v566
  %v736 = vunpack.c.h.b16 %v566
  %v737 = vunpack.c.l.b16 %v567
  %v738 = vunpack.c.h.b16 %v567
  %v739 = vunpack.c.l.b16 %v568
  %v740 = vunpack.c.h.b16 %v568
  %v741 = vunpack.c.l.b16 %v569
  %v742 = vunpack.c.h.b16 %v569
  %v743 = vunpack.c.l.b16 %v570
  %v744 = vunpack.c.h.b16 %v570
  %v745 = vunpack.c.l.b16 %v571
  %v746 = vunpack.c.h.b16 %v571
  %v747 = vunpack.c.l.b16 %v572
  %v748 = vunpack.c.h.b16 %v572
  %v749 = vunpack.c.l.b16 %v573
  %v750 = vunpack.c.h.b16 %v573
  %v751 = vunpack.c.l.b16 %v574
  %v752 = vunpack.c.h.b16 %v574
  %v753 = vunpack.c.l.b16 %v575
  %v754 = vunpack.c.h.b16 %v575
  %v755 = vunpack.c.l.b16 %v576
  %v756 = vunpack.c.h.b16 %v576
  %v757 = vunpack.c.l.b16 %v577
  %v758 = vunpack.c.h.b16 %v577
  %v759 = vunpack.c.l.b16 %v578
  %v760 = vunpack.c.h.b16 %v578
  %v761 = vunpack.c.l.b16 %v579
  %v762 = vunpack.c.h.b16 %v579
  %v763 = vunpack.c.l.b16 %v580
  %v764 = vunpack.c.h.b16 %v580
  %v765 = vunpack.c.l.b16 %v581
  %v766 = vunpack.c.h.b16 %v581
  %v767 = vunpack.c.l.b16 %v582
  %v768 = vunpack.c.h.b16 %v582
  %v769 = vunpack.c.l.b16 %v583
  %v770 = vunpack.c.h.b16 %v583
  %v771 = vunpack.c.l.b16 %v584
  %v772 = vunpack.c.h.b16 %v584
  %v773 = vunpack.c.l.b16 %v585
  %v774 = vunpack.c.h.b16 %v585
  %v775 = vunpack.c.l.b16 %v586
  %v776 = vunpack.c.h.b16 %v586
  %v777 = vpack.c.b16 %v715, %v713
  %v778 = vpack.c.b16 %v716, %v714
  %v779 = vpack.c.b16 %v719, %v717
  %v780 = vpack.c.b16 %v720, %v718
  %v781 = vpack.c.b16 %v723, %v721
  %v782 = vpack.c.b16 %v724, %v722
  %v783 = vpack.c.b16 %v727, %v725
  %v784 = vpack.c.b16 %v728, %v726
  %v785 = vpack.c.b16 %v731, %v729
  %v786 = vpack.c.b16 %v732, %v730
  %v787 = vpack.c.b16 %v735, %v733
  %v788 = vpack.c.b16 %v736, %v734
  %v789 = vpack.c.b16 %v739, %v737
  %v790 = vpack.c.b16 %v740, %v738
  %v791 = vpack.c.b16 %v743, %v741
  %v792 = vpack.c.b16 %v744, %v742
  %v793 = vpack.c.b16 %v747, %v745
  %v794 = vpack.c.b16 %v748, %v746
  %v795 = vpack.c.b16 %v751, %v749
  %v796 = vpack.c.b16 %v752, %v750
  %v797 = vpack.c.b16 %v755, %v753
  %v798 = vpack.c.b16 %v756, %v754
  %v799 = vpack.c.b16 %v759, %v757
  %v800 = vpack.c.b16 %v760, %v758
  %v801 = vpack.c.b16 %v763, %v761
  %v802 = vpack.c.b16 %v764, %v762
  %v803 = vpack.c.b16 %v767, %v765
  %v804 = vpack.c.b16 %v768, %v766
  %v805 = vpack.c.b16 %v771, %v769
  %v806 = vpack.c.b16 %v772, %v770
  %v807 = vpack.c.b16 %v775, %v773
  %v808 = vpack.c.b16 %v776, %v774
  %841 = vmatprep.subr.bf16.mxu0 %v792
  %842 = vmatpush1.bf16.msra.mxu0 %v791
  %843 = vmatprep.subr.bf16.mxu0 %v790
  %844 = vmatpush1.bf16.msra.mxu0 %v789
  %845 = vmatprep.subr.bf16.mxu0 %v788
  %846 = vmatpush1.bf16.msra.mxu0 %v787
  %847 = vmatprep.subr.bf16.mxu0 %v786
  %848 = vmatpush1.bf16.msra.mxu0 %v785
  %849 = vmatprep.subr.bf16.mxu0 %v784
  %850 = vmatpush1.bf16.msra.mxu0 %v783
  %851 = vmatprep.subr.bf16.mxu0 %v782
  %852 = vmatpush1.bf16.msra.mxu0 %v781
  %853 = vmatprep.subr.bf16.mxu0 %v780
  %854 = vmatpush1.bf16.msra.mxu0 %v779
  %855 = vmatprep.subr.bf16.mxu0 %v778
  %856 = vmatpush1.bf16.msra.mxu0 %v777
  %857 = vmatprep.subr.bf16.mxu0 %v808
  %858 = vmatpush2.bf16.msra.mxu0 %v807
  %859 = vmatprep.subr.bf16.mxu0 %v806
  %860 = vmatpush2.bf16.msra.mxu0 %v805
  %861 = vmatprep.subr.bf16.mxu0 %v804
  %862 = vmatpush2.bf16.msra.mxu0 %v803
  %863 = vmatprep.subr.bf16.mxu0 %v802
  %864 = vmatpush2.bf16.msra.mxu0 %v801
  %865 = vmatprep.subr.bf16.mxu0 %v800
  %866 = vmatpush2.bf16.msra.mxu0 %v799
  %867 = vmatprep.subr.bf16.mxu0 %v798
  %868 = vmatpush2.bf16.msra.mxu0 %v797
  %869 = vmatprep.subr.bf16.mxu0 %v796
  %870 = vmatpush2.bf16.msra.mxu0 %v795
  %871 = vmatprep.subr.bf16.mxu0 %v794
  %872 = vmatpush2.bf16.msra.mxu0 %v793
  %873 = vmatprep.mubr.bf16.mxu0 %v552
  %874 = vmatmul.mubr.bf16.gmra.mxu0 %v551
  %v875 = vpop.f32.mrf.mxu0
  %v876 = vadd.f32 %v673, %v875
  %v877 = vpop.f32.mrf.mxu0
  %v878 = vadd.f32 %v674, %v877
  %v879 = vpop.f32.mrf.mxu0
  %v880 = vadd.f32 %v675, %v879
  %v881 = vpop.f32.mrf.mxu0
  %v882 = vadd.f32 %v676, %v881
  %883 = vmatprep.mubr.bf16.mxu0 %v554
  %884 = vmatmul.mubr.bf16.gmra.mxu0 %v553
  %v885 = vpop.f32.mrf.mxu0
  %v886 = vadd.f32 %v677, %v885
  %v887 = vpop.f32.mrf.mxu0
  %v888 = vadd.f32 %v678, %v887
  %v889 = vpop.f32.mrf.mxu0
  %v890 = vadd.f32 %v679, %v889
  %v891 = vpop.f32.mrf.mxu0
  %v892 = vadd.f32 %v680, %v891
  %893 = vdwg.mxu0
  %v894 = vld [vmem:[%s6] sm:$0xff]
  %v895 = vld [vmem:[%s6 + $0x8] sm:$0xff]
  %v896 = vld [vmem:[%s6 + $0x10] sm:$0xff]
  %v897 = vld [vmem:[%s6 + $0x18] sm:$0xff]
  %v898 = vld [vmem:[%s6 + $0x20] sm:$0xff]
  %v899 = vld [vmem:[%s6 + $0x28] sm:$0xff]
  %v900 = vld [vmem:[%s6 + $0x30] sm:$0xff]
  %v901 = vld [vmem:[%s6 + $0x38] sm:$0xff]
  %v902 = vadd.f32 %v876, %v894
  %v903 = vadd.f32 %v878, %v895
  %v904 = vadd.f32 %v880, %v896
  %v905 = vadd.f32 %v882, %v897
  %v906 = vadd.f32 %v886, %v898
  %v907 = vadd.f32 %v888, %v899
  %v908 = vadd.f32 %v890, %v900
  %v909 = vadd.f32 %v892, %v901
  %v910 = vmul.f32 %v902, %v27
  %v911 = vmul.f32 %v903, %v28
  %v912 = vmul.f32 %v904, %v29
  %v913 = vmul.f32 %v905, %v30
  %v914 = vmul.f32 %v906, %v31
  %v915 = vmul.f32 %v907, %v32
  %v916 = vmul.f32 %v908, %v33
  %v917 = vmul.f32 %v909, %v34
  %918 = vst [vmem:[%s7] sm:$0xff] %v910
  %919 = vst [vmem:[%s7 + $0x8] sm:$0xff] %v911
  %920 = vst [vmem:[%s7 + $0x10] sm:$0xff] %v912
  %921 = vst [vmem:[%s7 + $0x18] sm:$0xff] %v913
  %922 = vst [vmem:[%s7 + $0x20] sm:$0xff] %v914
  %923 = vst [vmem:[%s7 + $0x28] sm:$0xff] %v915
  %924 = vst [vmem:[%s7 + $0x30] sm:$0xff] %v916
  %925 = vst [vmem:[%s7 + $0x38] sm:$0xff] %v917
  // Predicated region
  $region30: #{ssgu_forward.1} parent=0 // pred_check
    _
  $region31: #{ssgu_forward.1} parent=0 // pred_check_branch
    %927 = sbr.rel (0) target = $region33
  $region32: #{ssgu_forward.1} parent=0 // pred_region
    _
  $region33: #{ssgu_forward.1} parent=0 // pred_fallthru
    _
  // Predicated region
  $region34: #{ssgu_forward.1} parent=0 // pred_check
    _
  $region35: #{ssgu_forward.1} parent=0 // pred_check_branch
    %929 = sbr.rel (0) target = $region37
  $region36: #{ssgu_forward.1} parent=0 // pred_region
    _
  $region37: #{ssgu_forward.1} parent=0 // pred_fallthru
    _

</llo_original>
